<compile_context>
chip_gen: v5e
topology: v5e:2x2
jax: 0.10.0
libtpu: 0.0.40
codegen_flags: <defaults>
</compile_context>

<pallas_src>
import numpy as np
import jax
import jax.numpy as jnp
from jax import lax
from jax.experimental import pallas as pl
from jax.experimental.pallas import tpu as pltpu


def _make_kernel(num_head, dim_k, dim_v, batches_per_tile, seq_len):
    inv_sqrt_dk = float(1.0 / np.sqrt(np.float32(dim_k)))
    q_off = 0
    k_off = num_head * dim_k
    v_off = 2 * num_head * dim_k

    def kernel(x_ref, wqkv_ref, wcat_ref, bias_ref, o_ref, cat_ref):
        # ---- One wide QKV projection over all rows of this tile (MXU). ----
        # (rows, d_model) @ (d_model, H*(2*dim_k+dim_v)) -> f32 accumulate.
        qkv = jnp.dot(x_ref[...], wqkv_ref[...],
                      preferred_element_type=jnp.float32)

        # ---- Per (batch, head) attention; static unroll (both are small). ----
        for b in range(batches_per_tile):
            r0 = b * seq_len
            for h in range(num_head):
                qh = qkv[r0:r0 + seq_len, q_off + h * dim_k:q_off + (h + 1) * dim_k]
                kh = qkv[r0:r0 + seq_len, k_off + h * dim_k:k_off + (h + 1) * dim_k]
                vh = qkv[r0:r0 + seq_len, v_off + h * dim_v:v_off + (h + 1) * dim_v]

                # Fold 1/sqrt(dim_k) into q (f32 VPU), then bf16 for the MXU.
                qh_b = (qh * inv_sqrt_dk).astype(jnp.bfloat16)
                kh_b = kh.astype(jnp.bfloat16)

                # Q @ K^T without a materialized transpose: contract last dims.
                s = lax.dot_general(
                    qh_b, kh_b,
                    dimension_numbers=(((1,), (1,)), ((), ())),
                    preferred_element_type=jnp.float32)          # (S, S) f32

                # Numerically stable softmax along the last dim, all in f32.
                m = jnp.max(s, axis=-1, keepdims=True)
                e = jnp.exp(s - m)
                p = e * pl.reciprocal(jnp.sum(e, axis=-1, keepdims=True),
                                      approx=True)

                head_out = jnp.dot(p.astype(jnp.bfloat16),
                                   vh.astype(jnp.bfloat16),
                                   preferred_element_type=jnp.float32)

                # Lane-aligned scratch write (replaces jnp.concatenate).
                cat_ref[r0:r0 + seq_len, h * dim_v:(h + 1) * dim_v] = (
                    head_out.astype(jnp.bfloat16))

        # ---- One lane-dense output projection over all rows + bias. ----
        out = jnp.dot(cat_ref[...], wcat_ref[...],
                      preferred_element_type=jnp.float32)
        o_ref[...] = (out + bias_ref[...]).astype(o_ref.dtype)

    return kernel


def multi_attention(x, wq, wk, wv, wcat, bcat):
    """x: (B, S, d_model); wq/wk: (H, d_model, dim_k); wv: (H, d_model, dim_v);
    wcat: (H, dim_v, d_model); bcat: (1, d_model)."""
    B, S, d_model = x.shape
    H, _, dim_k = wq.shape
    dim_v = wv.shape[-1]
    w_tot = H * (2 * dim_k + dim_v)

    # ---- Layout plumbing (wrapper only) ----
    # Pack per-head weights so that w_all[:, h*dim:(h+1)*dim] == w[h], then fuse
    # Wq|Wk|Wv along lanes into a single (d_model, w_tot) matrix.
    wq_all = jnp.transpose(wq, (1, 0, 2)).reshape(d_model, H * dim_k)
    wk_all = jnp.transpose(wk, (1, 0, 2)).reshape(d_model, H * dim_k)
    wv_all = jnp.transpose(wv, (1, 0, 2)).reshape(d_model, H * dim_v)
    w_qkv = jnp.concatenate([wq_all, wk_all, wv_all], axis=1).astype(jnp.bfloat16)
    wcat_full = wcat.reshape(H * dim_v, d_model).astype(jnp.bfloat16)
    bias = bcat.astype(jnp.float32)

    # Flatten the batch*sequence row space so the MXU sees real M.
    x_flat = x.reshape(B * S, d_model).astype(jnp.bfloat16)

    # Rows-per-tile: aim for >=256 MXU rows per step, but stay batch-aligned.
    bt = min(B, max(1, 256 // max(S, 1)))
    while B % bt != 0:
        bt -= 1
    rows = bt * S
    num_tiles = B // bt
    assert (rows % 8 == 0) or (num_tiles == 1), "row tile must be sublane-aligned"

    kernel = _make_kernel(H, dim_k, dim_v, bt, S)

    # Advisory cost estimate.
    flops = (2 * B * S * d_model * w_tot                    # fused QKV projection
             + 2 * B * H * S * S * (dim_k + dim_v)          # scores + p @ v
             + 2 * B * S * (H * dim_v) * d_model)           # output projection
    bytes_accessed = (2 * B * S * d_model                   # x (bf16)
                      + 2 * d_model * w_tot                 # W_qkv (bf16)
                      + 2 * H * dim_v * d_model             # W_cat (bf16)
                      + 4 * d_model                         # bias (f32)
                      + 4 * B * S * d_model)                # out (f32)
    cost = pl.CostEstimate(flops=flops, transcendentals=B * H * S * S,
                           bytes_accessed=bytes_accessed)

    # Generation-aware VMEM cap (v7x has only 64 MiB physical VMEM).
    vmem_total = None
    try:
        vmem_total = getattr(pltpu.get_tpu_info(), "vmem_capacity_bytes", None)
    except Exception:
        vmem_total = None
    vmem_cap = (40 << 20) if (vmem_total is not None and vmem_total <= (64 << 20)) else (96 << 20)
    needed = (2 * rows * d_model * 2                         # x tile (dbl-buffered, bf16)
              + 2 * (d_model * w_tot + H * dim_v * d_model) * 2   # resident weights
              + 2 * d_model * 4                              # bias
              + 2 * rows * d_model * 4                       # out tile (f32)
              + rows * H * dim_v * 2                         # cat scratch (bf16)
              + rows * w_tot * 4)                            # qkv temporary (f32)
    vmem_bytes = min(max(int(needed) + (4 << 20), 16 << 20), vmem_cap)

    out_flat = pl.pallas_call(
        kernel,
        out_shape=jax.ShapeDtypeStruct((B * S, d_model), x.dtype),
        grid_spec=pltpu.PrefetchScalarGridSpec(
            num_scalar_prefetch=0,
            grid=(num_tiles,),
            in_specs=[
                pl.BlockSpec((rows, d_model), lambda r: (r, 0)),      # x rows
                pl.BlockSpec((d_model, w_tot), lambda r: (0, 0)),     # fused Wqkv (resident)
                pl.BlockSpec((H * dim_v, d_model), lambda r: (0, 0)),  # Wcat (resident)
                pl.BlockSpec((1, d_model), lambda r: (0, 0)),          # bias (resident)
            ],
            out_specs=pl.BlockSpec((rows, d_model), lambda r: (r, 0)),
            scratch_shapes=[pltpu.VMEM((rows, H * dim_v), jnp.bfloat16)],
        ),
        compiler_params=pltpu.CompilerParams(
            dimension_semantics=("parallel",),
            vmem_limit_bytes=vmem_bytes,
        ),
        cost_estimate=cost,
    )(x_flat, w_qkv, wcat_full, bias)

    return out_flat.reshape(B, S, d_model)


def multi_attention_ref(x, wq, wk, wv, wcat, bcat, dim_k):
    """Pure-JAX f32 reference matching the PyTorch forward semantics."""
    outs = []
    H = wq.shape[0]
    for h in range(H):
        q = x @ wq[h]
        k = x @ wk[h]
        v = x @ wv[h]
        s = (q @ jnp.swapaxes(k, -1, -2)) / jnp.sqrt(jnp.float32(dim_k))
        p = jax.nn.softmax(s, axis=-1)
        outs.append(p @ v)
    cat = jnp.concatenate(outs, axis=-1)                              # (B, S, H*dim_v)
    w_full = wcat.reshape(-1, wcat.shape[-1])                         # (H*dim_v, d_model)
    return cat @ w_full + bcat[0]


if __name__ == "__main__":
    # Small, lane-aligned shapes consistent with the module's forward.
    B, S, d_model = 2, 16, 128
    dim_k = dim_v = 128
    num_head = 2

    key = jax.random.PRNGKey(0)
    kx, kq, kk, kv, kc, kb = jax.random.split(key, 6)

    x = jax.random.normal(kx, (B, S, d_model), dtype=jnp.float32)
    # Deterministic synthetic weights (stored pre-transposed for right-multiply).
    wq = jax.random.normal(kq, (num_head, d_model, dim_k), dtype=jnp.float32) * 0.05
    wk = jax.random.normal(kk, (num_head, d_model, dim_k), dtype=jnp.float32) * 0.05
    wv = jax.random.normal(kv, (num_head, d_model, dim_v), dtype=jnp.float32) * 0.05
    wcat = jax.random.normal(kc, (num_head, dim_v, d_model), dtype=jnp.float32) * 0.05
    bcat = jax.random.normal(kb, (1, d_model), dtype=jnp.float32) * 0.1

    out = multi_attention(x, wq, wk, wv, wcat, bcat)
    out = jax.block_until_ready(out)

    ref = multi_attention_ref(x, wq, wk, wv, wcat, bcat, dim_k)
    # Tolerance accounts for bf16 MXU operands (f32 accumulation) and the
    # approx EUP reciprocal in the softmax denominator.
    np.testing.assert_allclose(np.asarray(out), np.asarray(ref), rtol=2e-2, atol=2e-2)

    print("KERNEL_OK")
</pallas_src>

<mosaic_0001>
module attributes {stable_mosaic.version = 11 : i64} {
  func.func @kernel(%arg0: i32, %arg1: memref<32x128xbf16, #tpu.memory_space<vmem>>, %arg2: memref<128x768xbf16, #tpu.memory_space<vmem>>, %arg3: memref<256x128xbf16, #tpu.memory_space<vmem>>, %arg4: memref<1x128xf32, #tpu.memory_space<vmem>>, %arg5: memref<32x128xf32, #tpu.memory_space<vmem>>, %arg6: memref<32x256xbf16, #tpu.memory_space<vmem>>) attributes {dimension_semantics = [#tpu.dimension_semantics<parallel>], iteration_bounds = array<i64: 1>, scalar_prefetch = 0 : i64, scratch_operands = 1 : i64, tpu.core_type = #tpu.core_type<tc>, window_params = [{transform_indices = @transform_0, window_bounds = array<i64: 32, 128>}, {pipeline_mode = #tpu.pipeline_mode<synchronous>, transform_indices = @transform_1, window_bounds = array<i64: 128, 768>}, {pipeline_mode = #tpu.pipeline_mode<synchronous>, transform_indices = @transform_2, window_bounds = array<i64: 256, 128>}, {pipeline_mode = #tpu.pipeline_mode<synchronous>, transform_indices = @transform_3, window_bounds = array<i64: 1, 128>}, {transform_indices = @transform_4, window_bounds = array<i64: 32, 128>}]} {
    %c0 = arith.constant 0 : index
    %c0_0 = arith.constant 0 : index
    %0 = vector.load %arg1[%c0, %c0_0] : memref<32x128xbf16, #tpu.memory_space<vmem>>, vector<32x128xbf16>
    %c0_1 = arith.constant 0 : index
    %c0_2 = arith.constant 0 : index
    %1 = vector.load %arg2[%c0_1, %c0_2] : memref<128x768xbf16, #tpu.memory_space<vmem>>, vector<128x768xbf16>
    %cst = arith.constant dense<0.000000e+00> : vector<32x768xf32>
    %2 = tpu.matmul %0, %1, %cst {dimension_numbers = #tpu.dot_dimension_numbers<[1], [0], [0], [1], [0, 0, 1, 1], [], []>} : vector<32x128xbf16>, vector<128x768xbf16>, vector<32x768xf32> -> vector<32x768xf32>
    %3 = vector.extract_strided_slice %2 {offsets = [0, 0], sizes = [16, 128], strides = [1, 1]} : vector<32x768xf32> to vector<16x128xf32>
    %4 = vector.extract_strided_slice %2 {offsets = [0, 256], sizes = [16, 128], strides = [1, 1]} : vector<32x768xf32> to vector<16x128xf32>
    %5 = vector.extract_strided_slice %2 {offsets = [0, 512], sizes = [16, 128], strides = [1, 1]} : vector<32x768xf32> to vector<16x128xf32>
    %cst_3 = arith.constant 0.0883883461 : f32
    %6 = vector.broadcast %cst_3 : f32 to vector<16x128xf32>
    %7 = arith.mulf %3, %6 : vector<16x128xf32>
    %8 = arith.truncf %7 : vector<16x128xf32> to vector<16x128xbf16>
    %9 = arith.truncf %4 : vector<16x128xf32> to vector<16x128xbf16>
    %cst_4 = arith.constant dense<0.000000e+00> : vector<16x16xf32>
    %10 = tpu.matmul %8, %9, %cst_4 {dimension_numbers = #tpu.dot_dimension_numbers<[1], [1], [0], [0], [0, 0, 1, 0], [], []>} : vector<16x128xbf16>, vector<16x128xbf16>, vector<16x16xf32> -> vector<16x16xf32>
    %cst_5 = arith.constant dense<0xFF800000> : vector<16xf32>
    %11 = vector.multi_reduction <maximumf>, %10, %cst_5 [1] : vector<16x16xf32> to vector<16xf32>
    %12 = vector.shape_cast %11 : vector<16xf32> to vector<16x1xf32>
    %13 = vector.broadcast %12 : vector<16x1xf32> to vector<16x16xf32>
    %14 = arith.subf %10, %13 : vector<16x16xf32>
    %15 = math.exp %14 : vector<16x16xf32>
    %cst_6 = arith.constant dense<0.000000e+00> : vector<16xf32>
    %16 = vector.multi_reduction <add>, %15, %cst_6 [1] : vector<16x16xf32> to vector<16xf32>
    %17 = vector.shape_cast %16 : vector<16xf32> to vector<16x1xf32>
    %18 = tpu.reciprocal %17 {approx = true} : vector<16x1xf32> -> vector<16x1xf32>
    %19 = vector.broadcast %18 : vector<16x1xf32> to vector<16x16xf32>
    %20 = arith.mulf %15, %19 : vector<16x16xf32>
    %21 = arith.truncf %20 : vector<16x16xf32> to vector<16x16xbf16>
    %22 = arith.truncf %5 : vector<16x128xf32> to vector<16x128xbf16>
    %cst_7 = arith.constant dense<0.000000e+00> : vector<16x128xf32>
    %23 = tpu.matmul %21, %22, %cst_7 {dimension_numbers = #tpu.dot_dimension_numbers<[1], [0], [0], [1], [0, 0, 1, 1], [], []>} : vector<16x16xbf16>, vector<16x128xbf16>, vector<16x128xf32> -> vector<16x128xf32>
    %24 = arith.truncf %23 : vector<16x128xf32> to vector<16x128xbf16>
    %c0_8 = arith.constant 0 : index
    %c0_9 = arith.constant 0 : index
    %25 = vector.load %arg6[%c0_8, %c0_9] : memref<32x256xbf16, #tpu.memory_space<vmem>>, vector<16x128xbf16>
    tpu.vector_store %arg6[%c0_8, %c0_9], %24 {strides = array<i32>} : memref<32x256xbf16, #tpu.memory_space<vmem>>, vector<16x128xbf16>,
    %26 = vector.extract_strided_slice %2 {offsets = [0, 128], sizes = [16, 128], strides = [1, 1]} : vector<32x768xf32> to vector<16x128xf32>
    %27 = vector.extract_strided_slice %2 {offsets = [0, 384], sizes = [16, 128], strides = [1, 1]} : vector<32x768xf32> to vector<16x128xf32>
    %28 = vector.extract_strided_slice %2 {offsets = [0, 640], sizes = [16, 128], strides = [1, 1]} : vector<32x768xf32> to vector<16x128xf32>
    %cst_10 = arith.constant 0.0883883461 : f32
    %29 = vector.broadcast %cst_10 : f32 to vector<16x128xf32>
    %30 = arith.mulf %26, %29 : vector<16x128xf32>
    %31 = arith.truncf %30 : vector<16x128xf32> to vector<16x128xbf16>
    %32 = arith.truncf %27 : vector<16x128xf32> to vector<16x128xbf16>
    %cst_11 = arith.constant dense<0.000000e+00> : vector<16x16xf32>
    %33 = tpu.matmul %31, %32, %cst_11 {dimension_numbers = #tpu.dot_dimension_numbers<[1], [1], [0], [0], [0, 0, 1, 0], [], []>} : vector<16x128xbf16>, vector<16x128xbf16>, vector<16x16xf32> -> vector<16x16xf32>
    %cst_12 = arith.constant dense<0xFF800000> : vector<16xf32>
    %34 = vector.multi_reduction <maximumf>, %33, %cst_12 [1] : vector<16x16xf32> to vector<16xf32>
    %35 = vector.shape_cast %34 : vector<16xf32> to vector<16x1xf32>
    %36 = vector.broadcast %35 : vector<16x1xf32> to vector<16x16xf32>
    %37 = arith.subf %33, %36 : vector<16x16xf32>
    %38 = math.exp %37 : vector<16x16xf32>
    %cst_13 = arith.constant dense<0.000000e+00> : vector<16xf32>
    %39 = vector.multi_reduction <add>, %38, %cst_13 [1] : vector<16x16xf32> to vector<16xf32>
    %40 = vector.shape_cast %39 : vector<16xf32> to vector<16x1xf32>
    %41 = tpu.reciprocal %40 {approx = true} : vector<16x1xf32> -> vector<16x1xf32>
    %42 = vector.broadcast %41 : vector<16x1xf32> to vector<16x16xf32>
    %43 = arith.mulf %38, %42 : vector<16x16xf32>
    %44 = arith.truncf %43 : vector<16x16xf32> to vector<16x16xbf16>
    %45 = arith.truncf %28 : vector<16x128xf32> to vector<16x128xbf16>
    %cst_14 = arith.constant dense<0.000000e+00> : vector<16x128xf32>
    %46 = tpu.matmul %44, %45, %cst_14 {dimension_numbers = #tpu.dot_dimension_numbers<[1], [0], [0], [1], [0, 0, 1, 1], [], []>} : vector<16x16xbf16>, vector<16x128xbf16>, vector<16x128xf32> -> vector<16x128xf32>
    %47 = arith.truncf %46 : vector<16x128xf32> to vector<16x128xbf16>
    %c0_15 = arith.constant 0 : index
    %c128 = arith.constant 128 : index
    %48 = vector.load %arg6[%c0_15, %c128] : memref<32x256xbf16, #tpu.memory_space<vmem>>, vector<16x128xbf16>
    tpu.vector_store %arg6[%c0_15, %c128], %47 {strides = array<i32>} : memref<32x256xbf16, #tpu.memory_space<vmem>>, vector<16x128xbf16>,
    %49 = vector.extract_strided_slice %2 {offsets = [16, 0], sizes = [16, 128], strides = [1, 1]} : vector<32x768xf32> to vector<16x128xf32>
    %50 = vector.extract_strided_slice %2 {offsets = [16, 256], sizes = [16, 128], strides = [1, 1]} : vector<32x768xf32> to vector<16x128xf32>
    %51 = vector.extract_strided_slice %2 {offsets = [16, 512], sizes = [16, 128], strides = [1, 1]} : vector<32x768xf32> to vector<16x128xf32>
    %cst_16 = arith.constant 0.0883883461 : f32
    %52 = vector.broadcast %cst_16 : f32 to vector<16x128xf32>
    %53 = arith.mulf %49, %52 : vector<16x128xf32>
    %54 = arith.truncf %53 : vector<16x128xf32> to vector<16x128xbf16>
    %55 = arith.truncf %50 : vector<16x128xf32> to vector<16x128xbf16>
    %cst_17 = arith.constant dense<0.000000e+00> : vector<16x16xf32>
    %56 = tpu.matmul %54, %55, %cst_17 {dimension_numbers = #tpu.dot_dimension_numbers<[1], [1], [0], [0], [0, 0, 1, 0], [], []>} : vector<16x128xbf16>, vector<16x128xbf16>, vector<16x16xf32> -> vector<16x16xf32>
    %cst_18 = arith.constant dense<0xFF800000> : vector<16xf32>
    %57 = vector.multi_reduction <maximumf>, %56, %cst_18 [1] : vector<16x16xf32> to vector<16xf32>
    %58 = vector.shape_cast %57 : vector<16xf32> to vector<16x1xf32>
    %59 = vector.broadcast %58 : vector<16x1xf32> to vector<16x16xf32>
    %60 = arith.subf %56, %59 : vector<16x16xf32>
    %61 = math.exp %60 : vector<16x16xf32>
    %cst_19 = arith.constant dense<0.000000e+00> : vector<16xf32>
    %62 = vector.multi_reduction <add>, %61, %cst_19 [1] : vector<16x16xf32> to vector<16xf32>
    %63 = vector.shape_cast %62 : vector<16xf32> to vector<16x1xf32>
    %64 = tpu.reciprocal %63 {approx = true} : vector<16x1xf32> -> vector<16x1xf32>
    %65 = vector.broadcast %64 : vector<16x1xf32> to vector<16x16xf32>
    %66 = arith.mulf %61, %65 : vector<16x16xf32>
    %67 = arith.truncf %66 : vector<16x16xf32> to vector<16x16xbf16>
    %68 = arith.truncf %51 : vector<16x128xf32> to vector<16x128xbf16>
    %cst_20 = arith.constant dense<0.000000e+00> : vector<16x128xf32>
    %69 = tpu.matmul %67, %68, %cst_20 {dimension_numbers = #tpu.dot_dimension_numbers<[1], [0], [0], [1], [0, 0, 1, 1], [], []>} : vector<16x16xbf16>, vector<16x128xbf16>, vector<16x128xf32> -> vector<16x128xf32>
    %70 = arith.truncf %69 : vector<16x128xf32> to vector<16x128xbf16>
    %c16 = arith.constant 16 : index
    %c0_21 = arith.constant 0 : index
    %71 = vector.load %arg6[%c16, %c0_21] : memref<32x256xbf16, #tpu.memory_space<vmem>>, vector<16x128xbf16>
    tpu.vector_store %arg6[%c16, %c0_21], %70 {strides = array<i32>} : memref<32x256xbf16, #tpu.memory_space<vmem>>, vector<16x128xbf16>,
    %72 = vector.extract_strided_slice %2 {offsets = [16, 128], sizes = [16, 128], strides = [1, 1]} : vector<32x768xf32> to vector<16x128xf32>
    %73 = vector.extract_strided_slice %2 {offsets = [16, 384], sizes = [16, 128], strides = [1, 1]} : vector<32x768xf32> to vector<16x128xf32>
    %74 = vector.extract_strided_slice %2 {offsets = [16, 640], sizes = [16, 128], strides = [1, 1]} : vector<32x768xf32> to vector<16x128xf32>
    %cst_22 = arith.constant 0.0883883461 : f32
    %75 = vector.broadcast %cst_22 : f32 to vector<16x128xf32>
    %76 = arith.mulf %72, %75 : vector<16x128xf32>
    %77 = arith.truncf %76 : vector<16x128xf32> to vector<16x128xbf16>
    %78 = arith.truncf %73 : vector<16x128xf32> to vector<16x128xbf16>
    %cst_23 = arith.constant dense<0.000000e+00> : vector<16x16xf32>
    %79 = tpu.matmul %77, %78, %cst_23 {dimension_numbers = #tpu.dot_dimension_numbers<[1], [1], [0], [0], [0, 0, 1, 0], [], []>} : vector<16x128xbf16>, vector<16x128xbf16>, vector<16x16xf32> -> vector<16x16xf32>
    %cst_24 = arith.constant dense<0xFF800000> : vector<16xf32>
    %80 = vector.multi_reduction <maximumf>, %79, %cst_24 [1] : vector<16x16xf32> to vector<16xf32>
    %81 = vector.shape_cast %80 : vector<16xf32> to vector<16x1xf32>
    %82 = vector.broadcast %81 : vector<16x1xf32> to vector<16x16xf32>
    %83 = arith.subf %79, %82 : vector<16x16xf32>
    %84 = math.exp %83 : vector<16x16xf32>
    %cst_25 = arith.constant dense<0.000000e+00> : vector<16xf32>
    %85 = vector.multi_reduction <add>, %84, %cst_25 [1] : vector<16x16xf32> to vector<16xf32>
    %86 = vector.shape_cast %85 : vector<16xf32> to vector<16x1xf32>
    %87 = tpu.reciprocal %86 {approx = true} : vector<16x1xf32> -> vector<16x1xf32>
    %88 = vector.broadcast %87 : vector<16x1xf32> to vector<16x16xf32>
    %89 = arith.mulf %84, %88 : vector<16x16xf32>
    %90 = arith.truncf %89 : vector<16x16xf32> to vector<16x16xbf16>
    %91 = arith.truncf %74 : vector<16x128xf32> to vector<16x128xbf16>
    %cst_26 = arith.constant dense<0.000000e+00> : vector<16x128xf32>
    %92 = tpu.matmul %90, %91, %cst_26 {dimension_numbers = #tpu.dot_dimension_numbers<[1], [0], [0], [1], [0, 0, 1, 1], [], []>} : vector<16x16xbf16>, vector<16x128xbf16>, vector<16x128xf32> -> vector<16x128xf32>
    %93 = arith.truncf %92 : vector<16x128xf32> to vector<16x128xbf16>
    %c16_27 = arith.constant 16 : index
    %c128_28 = arith.constant 128 : index
    %94 = vector.load %arg6[%c16_27, %c128_28] : memref<32x256xbf16, #tpu.memory_space<vmem>>, vector<16x128xbf16>
    tpu.vector_store %arg6[%c16_27, %c128_28], %93 {strides = array<i32>} : memref<32x256xbf16, #tpu.memory_space<vmem>>, vector<16x128xbf16>,
    %c0_29 = arith.constant 0 : index
    %c0_30 = arith.constant 0 : index
    %95 = vector.load %arg6[%c0_29, %c0_30] : memref<32x256xbf16, #tpu.memory_space<vmem>>, vector<32x256xbf16>
    %c0_31 = arith.constant 0 : index
    %c0_32 = arith.constant 0 : index
    %96 = vector.load %arg3[%c0_31, %c0_32] : memref<256x128xbf16, #tpu.memory_space<vmem>>, vector<256x128xbf16>
    %cst_33 = arith.constant dense<0.000000e+00> : vector<32x128xf32>
    %97 = tpu.matmul %95, %96, %cst_33 {dimension_numbers = #tpu.dot_dimension_numbers<[1], [0], [0], [1], [0, 0, 1, 1], [], []>} : vector<32x256xbf16>, vector<256x128xbf16>, vector<32x128xf32> -> vector<32x128xf32>
    %c0_34 = arith.constant 0 : index
    %c0_35 = arith.constant 0 : index
    %98 = vector.load %arg4[%c0_34, %c0_35] : memref<1x128xf32, #tpu.memory_space<vmem>>, vector<1x128xf32>
    %99 = vector.broadcast %98 : vector<1x128xf32> to vector<32x128xf32>
    %100 = arith.addf %97, %99 : vector<32x128xf32>
    %c0_36 = arith.constant 0 : index
    %c0_37 = arith.constant 0 : index
    %101 = vector.load %arg5[%c0_36, %c0_37] : memref<32x128xf32, #tpu.memory_space<vmem>>, vector<32x128xf32>
    tpu.vector_store %arg5[%c0_36, %c0_37], %100 {strides = array<i32>} : memref<32x128xf32, #tpu.memory_space<vmem>>, vector<32x128xf32>,
    return
  }
  func.func @transform_0(%arg0: i32) -> (i32, i32) {
    %c0_i32 = arith.constant 0 : i32
    %c0_i32_0 = arith.constant 0 : i32
    return %arg0, %c0_i32 : i32, i32
  }
  func.func @transform_1(%arg0: i32) -> (i32, i32) {
    %c0_i32 = arith.constant 0 : i32
    %c0_i32_0 = arith.constant 0 : i32
    %c0_i32_1 = arith.constant 0 : i32
    return %c0_i32, %c0_i32_0 : i32, i32
  }
  func.func @transform_2(%arg0: i32) -> (i32, i32) {
    %c0_i32 = arith.constant 0 : i32
    %c0_i32_0 = arith.constant 0 : i32
    %c0_i32_1 = arith.constant 0 : i32
    return %c0_i32, %c0_i32_0 : i32, i32
  }
  func.func @transform_3(%arg0: i32) -> (i32, i32) {
    %c0_i32 = arith.constant 0 : i32
    %c0_i32_0 = arith.constant 0 : i32
    %c0_i32_1 = arith.constant 0 : i32
    return %c0_i32, %c0_i32_0 : i32, i32
  }
  func.func @transform_4(%arg0: i32) -> (i32, i32) {
    %c0_i32 = arith.constant 0 : i32
    %c0_i32_0 = arith.constant 0 : i32
    return %arg0, %c0_i32 : i32, i32
  }
}

</mosaic_0001>

<llo_original>
// kernel: tpu_custom_call.1
$region0: #{tpu_custom_call.1}
  #allocation0 [shape = 'u32[]', space=smem, size = 0x4, offset = 0x4, fixed_abs, tag = 'smem constant byte address 0x4 - core index']
  #allocation1 [shape = 'u32[72,128]{1,0:T(1,128)}', space=vmem, size = 0x9000, scoped, tag = 'internal scratch']
  #allocation2 [shape = 'bf16[32,256]{1,0:T(8,128)(2,1)}', space=vmem, size = 0x4000, scoped, tag = 'scratch operand']
  %s0 = inlined_call_operand.hbm [shape: bf16[32,128], index: 0, kind: input, shape index: {}]
  %s1 = inlined_call_operand.hbm [shape: bf16[128,768], index: 1, kind: input, shape index: {}]
  %s2 = inlined_call_operand.hbm [shape: bf16[256,128], index: 2, kind: input, shape index: {}]
  %s3 = inlined_call_operand.vmem [shape: f32[1,128], index: 3, kind: input, shape index: {}]
  %s4 = inlined_call_operand.hbm [shape: f32[32,128], index: 4, kind: output, shape index: {}]
  %s5 = sld [smem:[#allocation0]]
  $region38: #{tpu_custom_call.1} parent=0
    _
  %s7 = ssub.s32 1, %s5
  %s8 = scalar_select 0, %s7, %s5
  $region1: #{tpu_custom_call.1} parent=0
    #allocation3 [shape = 'u8[8192]{0}', space=vmem, size = 0x2000, scoped, tag = 'input window, operand 0, single buffered']
    #allocation4 [shape = 's32[1]{0}', space=sflag, size = 0x4, scoped, tag = 'scoped memory for tpu_custom_call.1']
    #allocation5 [shape = 's32[1]{0}', space=sflag, size = 0x4, scoped, tag = 'scoped memory for tpu_custom_call.1']
    #allocation6 [shape = 'u8[196608]{0}', space=vmem, size = 0x30000, scoped, tag = 'input window, operand 1, single buffered']
    #allocation7 [shape = 's32[1]{0}', space=sflag, size = 0x4, scoped, tag = 'scoped memory for tpu_custom_call.1']
    #allocation8 [shape = 'u8[65536]{0}', space=vmem, size = 0x10000, scoped, tag = 'input window, operand 2, single buffered']
    #allocation9 [shape = 'u8[16384]{0}', space=vmem, size = 0x4000, scoped, tag = 'output window, operand 0, single buffered']
    %9 = vsyncpa [#allocation4], 0
    %10 = vsyncpa [#allocation7], 0
    %11 = vsyncpa [#allocation5], 0
    // Predicated region
    $region2: #{tpu_custom_call.1} parent=1 // pred_check
      _
    $region3: #{tpu_custom_call.1} parent=1 // pred_check_branch
      %13 = sbr.rel (0) target = $region5
    $region4: #{tpu_custom_call.1} parent=1 // pred_region
      %15 = vsyncadd [#allocation4], 0
      %s16 = sshll.u32 %s0, 4
      %s17 = int_to_ptr.hbm [resolvable:$true] %s16
      %s18 = sshll.u32 [#allocation3], 4
      %s19 = int_to_ptr.vmem [resolvable:$true] %s18
      %24 = dma.hbm_to_vmem [thread:$0]  %s17, 256, %s19, [#allocation4], 64, 64, 4
    $region5: #{tpu_custom_call.1} parent=1 // pred_fallthru
      _
    // Predicated region
    $region6: #{tpu_custom_call.1} parent=1 // pred_check
      _
    $region7: #{tpu_custom_call.1} parent=1 // pred_check_branch
      %26 = sbr.rel (0) target = $region9
    $region8: #{tpu_custom_call.1} parent=1 // pred_region
      %28 = vsyncadd [#allocation7], 0
      %s29 = sshll.u32 %s1, 4
      %s30 = int_to_ptr.hbm [resolvable:$true] %s29
      %s31 = sshll.u32 [#allocation6], 4
      %s32 = int_to_ptr.vmem [resolvable:$true] %s31
      %37 = dma.hbm_to_vmem [thread:$0]  %s30, 6144, %s32, [#allocation7], 384, 384, 24
    $region9: #{tpu_custom_call.1} parent=1 // pred_fallthru
      _
    // Predicated region
    $region10: #{tpu_custom_call.1} parent=1 // pred_check
      _
    $region11: #{tpu_custom_call.1} parent=1 // pred_check_branch
      %39 = sbr.rel (0) target = $region13
    $region12: #{tpu_custom_call.1} parent=1 // pred_region
      %41 = vsyncadd [#allocation7], 0
      %s42 = sshll.u32 %s2, 4
      %s43 = int_to_ptr.hbm [resolvable:$true] %s42
      %s44 = sshll.u32 [#allocation8], 4
      %s45 = int_to_ptr.vmem [resolvable:$true] %s44
      %50 = dma.hbm_to_vmem [thread:$0]  %s43, 2048, %s45, [#allocation7], 64, 64, 4
    $region13: #{tpu_custom_call.1} parent=1 // pred_fallthru
      _
    // Predicated region
    $region14: #{tpu_custom_call.1} parent=1 // pred_check
      _
    $region15: #{tpu_custom_call.1} parent=1 // pred_check_branch
      %52 = sbr.rel (0) target = $region17
    $region16: #{tpu_custom_call.1} parent=1 // pred_region
      _
    $region17: #{tpu_custom_call.1} parent=1 // pred_fallthru
      _
    // Predicated region
    $region18: #{tpu_custom_call.1} parent=1 // pred_check
      _
    $region19: #{tpu_custom_call.1} parent=1 // pred_check_branch
      %54 = sbr.rel (0) target = $region21
    $region20: #{tpu_custom_call.1} parent=1 // pred_region
      %56 = dma.done [#allocation4], 256
    $region21: #{tpu_custom_call.1} parent=1 // pred_fallthru
      _
    // Predicated region
    $region22: #{tpu_custom_call.1} parent=1 // pred_check
      _
    $region23: #{tpu_custom_call.1} parent=1 // pred_check_branch
      %58 = sbr.rel (0) target = $region25
    $region24: #{tpu_custom_call.1} parent=1 // pred_region
      %60 = dma.done [#allocation7], 6144
    $region25: #{tpu_custom_call.1} parent=1 // pred_fallthru
      _
    // Predicated region
    $region26: #{tpu_custom_call.1} parent=1 // pred_check
      _
    $region27: #{tpu_custom_call.1} parent=1 // pred_check_branch
      %62 = sbr.rel (0) target = $region29
    $region28: #{tpu_custom_call.1} parent=1 // pred_region
      %64 = dma.done [#allocation7], 2048
    $region29: #{tpu_custom_call.1} parent=1 // pred_fallthru
      _
    %v66 = vld [vmem:[#allocation3] sm:$0xf]
    %v67 = vld [vmem:[#allocation3 + $0x4] sm:$0xf]
    %v68 = vld [vmem:[#allocation3 + $0x8] sm:$0xf]
    %v69 = vld [vmem:[#allocation3 + $0xc] sm:$0xf]
    %v70 = vld [vmem:[#allocation6] sm:$0xff]
    %v71 = vld [vmem:[#allocation6 + $0x8] sm:$0xff]
    %v72 = vld [vmem:[#allocation6 + $0x10] sm:$0xff]
    %v73 = vld [vmem:[#allocation6 + $0x18] sm:$0xff]
    %v74 = vld [vmem:[#allocation6 + $0x20] sm:$0xff]
    %v75 = vld [vmem:[#allocation6 + $0x28] sm:$0xff]
    %v76 = vld [vmem:[#allocation6 + $0x30] sm:$0xff]
    %v77 = vld [vmem:[#allocation6 + $0x38] sm:$0xff]
    %v78 = vld [vmem:[#allocation6 + $0x40] sm:$0xff]
    %v79 = vld [vmem:[#allocation6 + $0x48] sm:$0xff]
    %v80 = vld [vmem:[#allocation6 + $0x50] sm:$0xff]
    %v81 = vld [vmem:[#allocation6 + $0x58] sm:$0xff]
    %v82 = vld [vmem:[#allocation6 + $0x60] sm:$0xff]
    %v83 = vld [vmem:[#allocation6 + $0x68] sm:$0xff]
    %v84 = vld [vmem:[#allocation6 + $0x70] sm:$0xff]
    %v85 = vld [vmem:[#allocation6 + $0x78] sm:$0xff]
    %v86 = vld [vmem:[#allocation6 + $0x80] sm:$0xff]
    %v87 = vld [vmem:[#allocation6 + $0x88] sm:$0xff]
    %v88 = vld [vmem:[#allocation6 + $0x90] sm:$0xff]
    %v89 = vld [vmem:[#allocation6 + $0x98] sm:$0xff]
    %v90 = vld [vmem:[#allocation6 + $0xa0] sm:$0xff]
    %v91 = vld [vmem:[#allocation6 + $0xa8] sm:$0xff]
    %v92 = vld [vmem:[#allocation6 + $0xb0] sm:$0xff]
    %v93 = vld [vmem:[#allocation6 + $0xb8] sm:$0xff]
    %v94 = vld [vmem:[#allocation6 + $0xc0] sm:$0xff]
    %v95 = vld [vmem:[#allocation6 + $0xc8] sm:$0xff]
    %v96 = vld [vmem:[#allocation6 + $0xd0] sm:$0xff]
    %v97 = vld [vmem:[#allocation6 + $0xd8] sm:$0xff]
    %v98 = vld [vmem:[#allocation6 + $0xe0] sm:$0xff]
    %v99 = vld [vmem:[#allocation6 + $0xe8] sm:$0xff]
    %v100 = vld [vmem:[#allocation6 + $0xf0] sm:$0xff]
    %v101 = vld [vmem:[#allocation6 + $0xf8] sm:$0xff]
    %v102 = vld [vmem:[#allocation6 + $0x100] sm:$0xff]
    %v103 = vld [vmem:[#allocation6 + $0x108] sm:$0xff]
    %v104 = vld [vmem:[#allocation6 + $0x110] sm:$0xff]
    %v105 = vld [vmem:[#allocation6 + $0x118] sm:$0xff]
    %v106 = vld [vmem:[#allocation6 + $0x120] sm:$0xff]
    %v107 = vld [vmem:[#allocation6 + $0x128] sm:$0xff]
    %v108 = vld [vmem:[#allocation6 + $0x130] sm:$0xff]
    %v109 = vld [vmem:[#allocation6 + $0x138] sm:$0xff]
    %v110 = vld [vmem:[#allocation6 + $0x140] sm:$0xff]
    %v111 = vld [vmem:[#allocation6 + $0x148] sm:$0xff]
    %v112 = vld [vmem:[#allocation6 + $0x150] sm:$0xff]
    %v113 = vld [vmem:[#allocation6 + $0x158] sm:$0xff]
    %v114 = vld [vmem:[#allocation6 + $0x160] sm:$0xff]
    %v115 = vld [vmem:[#allocation6 + $0x168] sm:$0xff]
    %v116 = vld [vmem:[#allocation6 + $0x170] sm:$0xff]
    %v117 = vld [vmem:[#allocation6 + $0x178] sm:$0xff]
    %v122 = vunpack.c.l.b16 %v66
    %v123 = vunpack.c.l.b16 %v67
    %v124 = vunpack.c.l.b16 %v68
    %v125 = vunpack.c.l.b16 %v69
    %v126 = vpack.c.b16 %v123, %v122
    %v127 = vpack.c.b16 %v125, %v124
    %v178 = vunpack.c.l.b16 %v70
    %v179 = vunpack.c.h.b16 %v70
    %v180 = vunpack.c.l.b16 %v71
    %v181 = vunpack.c.h.b16 %v71
    %v182 = vunpack.c.l.b16 %v72
    %v183 = vunpack.c.h.b16 %v72
    %v184 = vunpack.c.l.b16 %v73
    %v185 = vunpack.c.h.b16 %v73
    %v186 = vunpack.c.l.b16 %v74
    %v187 = vunpack.c.h.b16 %v74
    %v188 = vunpack.c.l.b16 %v75
    %v189 = vunpack.c.h.b16 %v75
    %v190 = vunpack.c.l.b16 %v76
    %v191 = vunpack.c.h.b16 %v76
    %v192 = vunpack.c.l.b16 %v77
    %v193 = vunpack.c.h.b16 %v77
    %v194 = vunpack.c.l.b16 %v78
    %v195 = vunpack.c.h.b16 %v78
    %v196 = vunpack.c.l.b16 %v79
    %v197 = vunpack.c.h.b16 %v79
    %v198 = vunpack.c.l.b16 %v80
    %v199 = vunpack.c.h.b16 %v80
    %v200 = vunpack.c.l.b16 %v81
    %v201 = vunpack.c.h.b16 %v81
    %v202 = vunpack.c.l.b16 %v82
    %v203 = vunpack.c.h.b16 %v82
    %v204 = vunpack.c.l.b16 %v83
    %v205 = vunpack.c.h.b16 %v83
    %v206 = vunpack.c.l.b16 %v84
    %v207 = vunpack.c.h.b16 %v84
    %v208 = vunpack.c.l.b16 %v85
    %v209 = vunpack.c.h.b16 %v85
    %v210 = vunpack.c.l.b16 %v86
    %v211 = vunpack.c.h.b16 %v86
    %v212 = vunpack.c.l.b16 %v87
    %v213 = vunpack.c.h.b16 %v87
    %v214 = vunpack.c.l.b16 %v88
    %v215 = vunpack.c.h.b16 %v88
    %v216 = vunpack.c.l.b16 %v89
    %v217 = vunpack.c.h.b16 %v89
    %v218 = vunpack.c.l.b16 %v90
    %v219 = vunpack.c.h.b16 %v90
    %v220 = vunpack.c.l.b16 %v91
    %v221 = vunpack.c.h.b16 %v91
    %v222 = vunpack.c.l.b16 %v92
    %v223 = vunpack.c.h.b16 %v92
    %v224 = vunpack.c.l.b16 %v93
    %v225 = vunpack.c.h.b16 %v93
    %v226 = vunpack.c.l.b16 %v94
    %v227 = vunpack.c.h.b16 %v94
    %v228 = vunpack.c.l.b16 %v95
    %v229 = vunpack.c.h.b16 %v95
    %v230 = vunpack.c.l.b16 %v96
    %v231 = vunpack.c.h.b16 %v96
    %v232 = vunpack.c.l.b16 %v97
    %v233 = vunpack.c.h.b16 %v97
    %v234 = vunpack.c.l.b16 %v98
    %v235 = vunpack.c.h.b16 %v98
    %v236 = vunpack.c.l.b16 %v99
    %v237 = vunpack.c.h.b16 %v99
    %v238 = vunpack.c.l.b16 %v100
    %v239 = vunpack.c.h.b16 %v100
    %v240 = vunpack.c.l.b16 %v101
    %v241 = vunpack.c.h.b16 %v101
    %v242 = vunpack.c.l.b16 %v102
    %v243 = vunpack.c.h.b16 %v102
    %v244 = vunpack.c.l.b16 %v103
    %v245 = vunpack.c.h.b16 %v103
    %v246 = vunpack.c.l.b16 %v104
    %v247 = vunpack.c.h.b16 %v104
    %v248 = vunpack.c.l.b16 %v105
    %v249 = vunpack.c.h.b16 %v105
    %v250 = vunpack.c.l.b16 %v106
    %v251 = vunpack.c.h.b16 %v106
    %v252 = vunpack.c.l.b16 %v107
    %v253 = vunpack.c.h.b16 %v107
    %v254 = vunpack.c.l.b16 %v108
    %v255 = vunpack.c.h.b16 %v108
    %v256 = vunpack.c.l.b16 %v109
    %v257 = vunpack.c.h.b16 %v109
    %v258 = vunpack.c.l.b16 %v110
    %v259 = vunpack.c.h.b16 %v110
    %v260 = vunpack.c.l.b16 %v111
    %v261 = vunpack.c.h.b16 %v111
    %v262 = vunpack.c.l.b16 %v112
    %v263 = vunpack.c.h.b16 %v112
    %v264 = vunpack.c.l.b16 %v113
    %v265 = vunpack.c.h.b16 %v113
    %v266 = vunpack.c.l.b16 %v114
    %v267 = vunpack.c.h.b16 %v114
    %v268 = vunpack.c.l.b16 %v115
    %v269 = vunpack.c.h.b16 %v115
    %v270 = vunpack.c.l.b16 %v116
    %v271 = vunpack.c.h.b16 %v116
    %v272 = vunpack.c.l.b16 %v117
    %v273 = vunpack.c.h.b16 %v117
    %v274 = vpack.c.b16 %v184, %v178
    %v275 = vpack.c.b16 %v185, %v179
    %v276 = vpack.c.b16 %v186, %v180
    %v277 = vpack.c.b16 %v187, %v181
    %v278 = vpack.c.b16 %v188, %v182
    %v279 = vpack.c.b16 %v189, %v183
    %v280 = vpack.c.b16 %v196, %v190
    %v281 = vpack.c.b16 %v197, %v191
    %v282 = vpack.c.b16 %v198, %v192
    %v283 = vpack.c.b16 %v199, %v193
    %v284 = vpack.c.b16 %v200, %v194
    %v285 = vpack.c.b16 %v201, %v195
    %v286 = vpack.c.b16 %v208, %v202
    %v287 = vpack.c.b16 %v209, %v203
    %v288 = vpack.c.b16 %v210, %v204
    %v289 = vpack.c.b16 %v211, %v205
    %v290 = vpack.c.b16 %v212, %v206
    %v291 = vpack.c.b16 %v213, %v207
    %v292 = vpack.c.b16 %v220, %v214
    %v293 = vpack.c.b16 %v221, %v215
    %v294 = vpack.c.b16 %v222, %v216
    %v295 = vpack.c.b16 %v223, %v217
    %v296 = vpack.c.b16 %v224, %v218
    %v297 = vpack.c.b16 %v225, %v219
    %v298 = vpack.c.b16 %v232, %v226
    %v299 = vpack.c.b16 %v233, %v227
    %v300 = vpack.c.b16 %v234, %v228
    %v301 = vpack.c.b16 %v235, %v229
    %v302 = vpack.c.b16 %v236, %v230
    %v303 = vpack.c.b16 %v237, %v231
    %v304 = vpack.c.b16 %v244, %v238
    %v305 = vpack.c.b16 %v245, %v239
    %v306 = vpack.c.b16 %v246, %v240
    %v307 = vpack.c.b16 %v247, %v241
    %v308 = vpack.c.b16 %v248, %v242
    %v309 = vpack.c.b16 %v249, %v243
    %v310 = vpack.c.b16 %v256, %v250
    %v311 = vpack.c.b16 %v257, %v251
    %v312 = vpack.c.b16 %v258, %v252
    %v313 = vpack.c.b16 %v259, %v253
    %v314 = vpack.c.b16 %v260, %v254
    %v315 = vpack.c.b16 %v261, %v255
    %v316 = vpack.c.b16 %v268, %v262
    %v317 = vpack.c.b16 %v269, %v263
    %v318 = vpack.c.b16 %v270, %v264
    %v319 = vpack.c.b16 %v271, %v265
    %v320 = vpack.c.b16 %v272, %v266
    %v321 = vpack.c.b16 %v273, %v267
    %370 = vmatpush.bf16.msra.mxu0 %v316
    %371 = vmatpush.bf16.msra.mxu0 %v310
    %372 = vmatpush.bf16.msra.mxu0 %v304
    %373 = vmatpush.bf16.msra.mxu0 %v298
    %374 = vmatpush.bf16.msra.mxu0 %v292
    %375 = vmatpush.bf16.msra.mxu0 %v286
    %376 = vmatpush.bf16.msra.mxu0 %v280
    %377 = vmatpush.bf16.msra.mxu0 %v274
    %378 = vmatmul.bf16.gmra.mxu0 %v126
    %v379 = vpop.f32.mrf.mxu0
    %v380 = vadd.f32 0.0, %v379
    %v381 = vpop.f32.mrf.mxu0
    %v382 = vadd.f32 0.0, %v381
    %383 = vmatmul.bf16.gmra.mxu0 %v127
    %v384 = vpop.f32.mrf.mxu0
    %v385 = vadd.f32 0.0, %v384
    %v386 = vpop.f32.mrf.mxu0
    %v387 = vadd.f32 0.0, %v386
    %388 = vdwg.mxu0
    %389 = vmatpush.bf16.msra.mxu0 %v317
    %390 = vmatpush.bf16.msra.mxu0 %v311
    %391 = vmatpush.bf16.msra.mxu0 %v305
    %392 = vmatpush.bf16.msra.mxu0 %v299
    %393 = vmatpush.bf16.msra.mxu0 %v293
    %394 = vmatpush.bf16.msra.mxu0 %v287
    %395 = vmatpush.bf16.msra.mxu0 %v281
    %396 = vmatpush.bf16.msra.mxu0 %v275
    %397 = vmatmul.bf16.gmra.mxu0 %v126
    %v398 = vpop.f32.mrf.mxu0
    %v399 = vadd.f32 0.0, %v398
    %v400 = vpop.f32.mrf.mxu0
    %v401 = vadd.f32 0.0, %v400
    %402 = vmatmul.bf16.gmra.mxu0 %v127
    %v403 = vpop.f32.mrf.mxu0
    %v404 = vadd.f32 0.0, %v403
    %v405 = vpop.f32.mrf.mxu0
    %v406 = vadd.f32 0.0, %v405
    %407 = vdwg.mxu0
    %408 = vmatpush.bf16.msra.mxu0 %v318
    %409 = vmatpush.bf16.msra.mxu0 %v312
    %410 = vmatpush.bf16.msra.mxu0 %v306
    %411 = vmatpush.bf16.msra.mxu0 %v300
    %412 = vmatpush.bf16.msra.mxu0 %v294
    %413 = vmatpush.bf16.msra.mxu0 %v288
    %414 = vmatpush.bf16.msra.mxu0 %v282
    %415 = vmatpush.bf16.msra.mxu0 %v276
    %416 = vmatmul.bf16.gmra.mxu0 %v126
    %v417 = vpop.f32.mrf.mxu0
    %v418 = vadd.f32 0.0, %v417
    %v419 = vpop.f32.mrf.mxu0
    %v420 = vadd.f32 0.0, %v419
    %421 = vmatmul.bf16.gmra.mxu0 %v127
    %v422 = vpop.f32.mrf.mxu0
    %v423 = vadd.f32 0.0, %v422
    %v424 = vpop.f32.mrf.mxu0
    %v425 = vadd.f32 0.0, %v424
    %426 = vdwg.mxu0
    %427 = vmatpush.bf16.msra.mxu0 %v319
    %428 = vmatpush.bf16.msra.mxu0 %v313
    %429 = vmatpush.bf16.msra.mxu0 %v307
    %430 = vmatpush.bf16.msra.mxu0 %v301
    %431 = vmatpush.bf16.msra.mxu0 %v295
    %432 = vmatpush.bf16.msra.mxu0 %v289
    %433 = vmatpush.bf16.msra.mxu0 %v283
    %434 = vmatpush.bf16.msra.mxu0 %v277
    %435 = vmatmul.bf16.gmra.mxu0 %v126
    %v436 = vpop.f32.mrf.mxu0
    %v437 = vadd.f32 0.0, %v436
    %v438 = vpop.f32.mrf.mxu0
    %v439 = vadd.f32 0.0, %v438
    %440 = vmatmul.bf16.gmra.mxu0 %v127
    %v441 = vpop.f32.mrf.mxu0
    %v442 = vadd.f32 0.0, %v441
    %v443 = vpop.f32.mrf.mxu0
    %v444 = vadd.f32 0.0, %v443
    %445 = vdwg.mxu0
    %446 = vmatpush.bf16.msra.mxu0 %v320
    %447 = vmatpush.bf16.msra.mxu0 %v314
    %448 = vmatpush.bf16.msra.mxu0 %v308
    %449 = vmatpush.bf16.msra.mxu0 %v302
    %450 = vmatpush.bf16.msra.mxu0 %v296
    %451 = vmatpush.bf16.msra.mxu0 %v290
    %452 = vmatpush.bf16.msra.mxu0 %v284
    %453 = vmatpush.bf16.msra.mxu0 %v278
    %454 = vmatmul.bf16.gmra.mxu0 %v126
    %v455 = vpop.f32.mrf.mxu0
    %v456 = vadd.f32 0.0, %v455
    %v457 = vpop.f32.mrf.mxu0
    %v458 = vadd.f32 0.0, %v457
    %459 = vmatmul.bf16.gmra.mxu0 %v127
    %v460 = vpop.f32.mrf.mxu0
    %v461 = vadd.f32 0.0, %v460
    %v462 = vpop.f32.mrf.mxu0
    %v463 = vadd.f32 0.0, %v462
    %464 = vdwg.mxu0
    %465 = vmatpush.bf16.msra.mxu0 %v321
    %466 = vmatpush.bf16.msra.mxu0 %v315
    %467 = vmatpush.bf16.msra.mxu0 %v309
    %468 = vmatpush.bf16.msra.mxu0 %v303
    %469 = vmatpush.bf16.msra.mxu0 %v297
    %470 = vmatpush.bf16.msra.mxu0 %v291
    %471 = vmatpush.bf16.msra.mxu0 %v285
    %472 = vmatpush.bf16.msra.mxu0 %v279
    %473 = vmatmul.bf16.gmra.mxu0 %v126
    %v474 = vpop.f32.mrf.mxu0
    %v475 = vadd.f32 0.0, %v474
    %v476 = vpop.f32.mrf.mxu0
    %v477 = vadd.f32 0.0, %v476
    %478 = vmatmul.bf16.gmra.mxu0 %v127
    %v479 = vpop.f32.mrf.mxu0
    %v480 = vadd.f32 0.0, %v479
    %v481 = vpop.f32.mrf.mxu0
    %v482 = vadd.f32 0.0, %v481
    %483 = vdwg.mxu0
    %v484 = vmul.f32 %v380, 0.088388346
    %v485 = vmul.f32 %v382, 0.088388346
    %v486 = vpack.c.bf16 %v485, %v484
    %v487 = vpack.c.bf16 %v420, %v418
    %488 = vmatpush.bf16.xpose.msra.mxu0 0
    %489 = vmatpush.bf16.xpose.msra.mxu0 0
    %490 = vmatpush.bf16.xpose.msra.mxu0 0
    %491 = vmatpush.bf16.xpose.msra.mxu0 0
    %492 = vmatpush.bf16.xpose.msra.mxu0 0
    %493 = vmatpush.bf16.xpose.msra.mxu0 0
    %494 = vmatpush.bf16.xpose.msra.mxu0 0
    %495 = vmatpush.bf16.xpose.msra.mxu0 %v487
    %496 = vmatmul.bf16.gmra.mxu0 %v486
    %v497 = vpop.f32.mrf.mxu0
    %v498 = vadd.f32 0.0, %v497
    %v499 = vpop.f32.mrf.mxu0
    %v500 = vadd.f32 0.0, %v499
    %501 = vdwg.mxu0
    %vm502 = vcmask 130048
    %v503 = vsel %vm502, %v498, -inf
    %504 = vmax.xlane.f32.xlu0 %v503
    %v505 = vpop.xlane.xlu0 %504
    %v506 = vsel %vm502, %v500, -inf
    %507 = vmax.xlane.f32.xlu0 %v506
    %v508 = vpop.xlane.xlu0 %507
    %v509 = vsub.f32 %v498, %v505
    %v510 = vsub.f32 %v500, %v508
    %v511 = vmul.f32 %v509, 1.442695
    %v512 = vpow.pop %v511
    %v513 = vmul.f32 %v510, 1.442695
    %v514 = vpow.pop %v513
    %v515 = vsel %vm502, %v512, 0.0
    %516 = vadd.xlane.f32.xlu0 %v515
    %v517 = vpop.xlane.xlu0 %516
    %v518 = vsel %vm502, %v514, 0.0
    %519 = vadd.xlane.f32.xlu0 %v518
    %v520 = vpop.xlane.xlu0 %519
    %v521 = vrcp.pop %v517
    %v522 = vrcp.pop %v520
    %v523 = vmul.f32 %v512, %v521
    %v524 = vmul.f32 %v514, %v522
    %v525 = vpack.c.bf16 %v524, %v523
    %v526 = vpack.c.bf16 %v458, %v456
    %v528 = vsel %vm502, %v525, 0
    %530 = vmatpush.bf16.msra.mxu0 0
    %531 = vmatpush.bf16.msra.mxu0 0
    %532 = vmatpush.bf16.msra.mxu0 0
    %533 = vmatpush.bf16.msra.mxu0 0
    %534 = vmatpush.bf16.msra.mxu0 0
    %535 = vmatpush.bf16.msra.mxu0 0
    %536 = vmatpush.bf16.msra.mxu0 0
    %537 = vmatpush.bf16.msra.mxu0 %v526
    %538 = vmatmul.bf16.gmra.mxu0 %v528
    %v539 = vpop.f32.mrf.mxu0
    %v540 = vadd.f32 0.0, %v539
    %v541 = vpop.f32.mrf.mxu0
    %v542 = vadd.f32 0.0, %v541
    %543 = vdwg.mxu0
    %v544 = vpack.c.bf16 %v540, %v540
    %v545 = vpack.c.bf16 %v542, %v542
    %546 = vst [vmem:[#allocation2] sm:$0xf] %v544
    %547 = vst [vmem:[#allocation2 + $0x8] sm:$0xf] %v545
    %v548 = vmul.f32 %v399, 0.088388346
    %v549 = vmul.f32 %v401, 0.088388346
    %v550 = vpack.c.bf16 %v549, %v548
    %v551 = vpack.c.bf16 %v439, %v437
    %552 = vmatpush.bf16.xpose.msra.mxu0 0
    %553 = vmatpush.bf16.xpose.msra.mxu0 0
    %554 = vmatpush.bf16.xpose.msra.mxu0 0
    %555 = vmatpush.bf16.xpose.msra.mxu0 0
    %556 = vmatpush.bf16.xpose.msra.mxu0 0
    %557 = vmatpush.bf16.xpose.msra.mxu0 0
    %558 = vmatpush.bf16.xpose.msra.mxu0 0
    %559 = vmatpush.bf16.xpose.msra.mxu0 %v551
    %560 = vmatmul.bf16.gmra.mxu0 %v550
    %v561 = vpop.f32.mrf.mxu0
    %v562 = vadd.f32 0.0, %v561
    %v563 = vpop.f32.mrf.mxu0
    %v564 = vadd.f32 0.0, %v563
    %565 = vdwg.mxu0
    %v566 = vsel %vm502, %v562, -inf
    %567 = vmax.xlane.f32.xlu0 %v566
    %v568 = vpop.xlane.xlu0 %567
    %v569 = vsel %vm502, %v564, -inf
    %570 = vmax.xlane.f32.xlu0 %v569
    %v571 = vpop.xlane.xlu0 %570
    %v572 = vsub.f32 %v562, %v568
    %v573 = vsub.f32 %v564, %v571
    %v574 = vmul.f32 %v572, 1.442695
    %v575 = vpow.pop %v574
    %v576 = vmul.f32 %v573, 1.442695
    %v577 = vpow.pop %v576
    %v578 = vsel %vm502, %v575, 0.0
    %579 = vadd.xlane.f32.xlu0 %v578
    %v580 = vpop.xlane.xlu0 %579
    %v581 = vsel %vm502, %v577, 0.0
    %582 = vadd.xlane.f32.xlu0 %v581
    %v583 = vpop.xlane.xlu0 %582
    %v584 = vrcp.pop %v580
    %v585 = vrcp.pop %v583
    %v586 = vmul.f32 %v575, %v584
    %v587 = vmul.f32 %v577, %v585
    %v588 = vpack.c.bf16 %v587, %v586
    %v589 = vpack.c.bf16 %v477, %v475
    %v591 = vsel %vm502, %v588, 0
    %593 = vmatpush.bf16.msra.mxu0 0
    %594 = vmatpush.bf16.msra.mxu0 0
    %595 = vmatpush.bf16.msra.mxu0 0
    %596 = vmatpush.bf16.msra.mxu0 0
    %597 = vmatpush.bf16.msra.mxu0 0
    %598 = vmatpush.bf16.msra.mxu0 0
    %599 = vmatpush.bf16.msra.mxu0 0
    %600 = vmatpush.bf16.msra.mxu0 %v589
    %601 = vmatmul.bf16.gmra.mxu0 %v591
    %v602 = vpop.f32.mrf.mxu0
    %v603 = vadd.f32 0.0, %v602
    %v604 = vpop.f32.mrf.mxu0
    %v605 = vadd.f32 0.0, %v604
    %606 = vdwg.mxu0
    %v607 = vpack.c.bf16 %v603, %v603
    %v608 = vpack.c.bf16 %v605, %v605
    %609 = vst [vmem:[#allocation2 + $0x4] sm:$0xf] %v607
    %610 = vst [vmem:[#allocation2 + $0xc] sm:$0xf] %v608
    %v611 = vmul.f32 %v385, 0.088388346
    %v612 = vmul.f32 %v387, 0.088388346
    %v613 = vpack.c.bf16 %v612, %v611
    %v614 = vpack.c.bf16 %v425, %v423
    %615 = vmatpush.bf16.xpose.msra.mxu0 0
    %616 = vmatpush.bf16.xpose.msra.mxu0 0
    %617 = vmatpush.bf16.xpose.msra.mxu0 0
    %618 = vmatpush.bf16.xpose.msra.mxu0 0
    %619 = vmatpush.bf16.xpose.msra.mxu0 0
    %620 = vmatpush.bf16.xpose.msra.mxu0 0
    %621 = vmatpush.bf16.xpose.msra.mxu0 0
    %622 = vmatpush.bf16.xpose.msra.mxu0 %v614
    %623 = vmatmul.bf16.gmra.mxu0 %v613
    %v624 = vpop.f32.mrf.mxu0
    %v625 = vadd.f32 0.0, %v624
    %v626 = vpop.f32.mrf.mxu0
    %v627 = vadd.f32 0.0, %v626
    %628 = vdwg.mxu0
    %v629 = vsel %vm502, %v625, -inf
    %630 = vmax.xlane.f32.xlu0 %v629
    %v631 = vpop.xlane.xlu0 %630
    %v632 = vsel %vm502, %v627, -inf
    %633 = vmax.xlane.f32.xlu0 %v632
    %v634 = vpop.xlane.xlu0 %633
    %v635 = vsub.f32 %v625, %v631
    %v636 = vsub.f32 %v627, %v634
    %v637 = vmul.f32 %v635, 1.442695
    %v638 = vpow.pop %v637
    %v639 = vmul.f32 %v636, 1.442695
    %v640 = vpow.pop %v639
    %v641 = vsel %vm502, %v638, 0.0
    %642 = vadd.xlane.f32.xlu0 %v641
    %v643 = vpop.xlane.xlu0 %642
    %v644 = vsel %vm502, %v640, 0.0
    %645 = vadd.xlane.f32.xlu0 %v644
    %v646 = vpop.xlane.xlu0 %645
    %v647 = vrcp.pop %v643
    %v648 = vrcp.pop %v646
    %v649 = vmul.f32 %v638, %v647
    %v650 = vmul.f32 %v640, %v648
    %v651 = vpack.c.bf16 %v650, %v649
    %v652 = vpack.c.bf16 %v463, %v461
    %v654 = vsel %vm502, %v651, 0
    %656 = vmatpush.bf16.msra.mxu0 0
    %657 = vmatpush.bf16.msra.mxu0 0
    %658 = vmatpush.bf16.msra.mxu0 0
    %659 = vmatpush.bf16.msra.mxu0 0
    %660 = vmatpush.bf16.msra.mxu0 0
    %661 = vmatpush.bf16.msra.mxu0 0
    %662 = vmatpush.bf16.msra.mxu0 0
    %663 = vmatpush.bf16.msra.mxu0 %v652
    %664 = vmatmul.bf16.gmra.mxu0 %v654
    %v665 = vpop.f32.mrf.mxu0
    %v666 = vadd.f32 0.0, %v665
    %v667 = vpop.f32.mrf.mxu0
    %v668 = vadd.f32 0.0, %v667
    %669 = vdwg.mxu0
    %v670 = vpack.c.bf16 %v666, %v666
    %v671 = vpack.c.bf16 %v668, %v668
    %672 = vst [vmem:[#allocation2 + $0x10] sm:$0xf] %v670
    %673 = vst [vmem:[#allocation2 + $0x18] sm:$0xf] %v671
    %v674 = vmul.f32 %v404, 0.088388346
    %v675 = vmul.f32 %v406, 0.088388346
    %v676 = vpack.c.bf16 %v675, %v674
    %v677 = vpack.c.bf16 %v444, %v442
    %678 = vmatpush.bf16.xpose.msra.mxu0 0
    %679 = vmatpush.bf16.xpose.msra.mxu0 0
    %680 = vmatpush.bf16.xpose.msra.mxu0 0
    %681 = vmatpush.bf16.xpose.msra.mxu0 0
    %682 = vmatpush.bf16.xpose.msra.mxu0 0
    %683 = vmatpush.bf16.xpose.msra.mxu0 0
    %684 = vmatpush.bf16.xpose.msra.mxu0 0
    %685 = vmatpush.bf16.xpose.msra.mxu0 %v677
    %686 = vmatmul.bf16.gmra.mxu0 %v676
    %v687 = vpop.f32.mrf.mxu0
    %v688 = vadd.f32 0.0, %v687
    %v689 = vpop.f32.mrf.mxu0
    %v690 = vadd.f32 0.0, %v689
    %691 = vdwg.mxu0
    %v692 = vsel %vm502, %v688, -inf
    %693 = vmax.xlane.f32.xlu0 %v692
    %v694 = vpop.xlane.xlu0 %693
    %v695 = vsel %vm502, %v690, -inf
    %696 = vmax.xlane.f32.xlu0 %v695
    %v697 = vpop.xlane.xlu0 %696
    %v698 = vsub.f32 %v688, %v694
    %v699 = vsub.f32 %v690, %v697
    %v700 = vmul.f32 %v698, 1.442695
    %v701 = vpow.pop %v700
    %v702 = vmul.f32 %v699, 1.442695
    %v703 = vpow.pop %v702
    %v704 = vsel %vm502, %v701, 0.0
    %705 = vadd.xlane.f32.xlu0 %v704
    %v706 = vpop.xlane.xlu0 %705
    %v707 = vsel %vm502, %v703, 0.0
    %708 = vadd.xlane.f32.xlu0 %v707
    %v709 = vpop.xlane.xlu0 %708
    %v710 = vrcp.pop %v706
    %v711 = vrcp.pop %v709
    %v712 = vmul.f32 %v701, %v710
    %v713 = vmul.f32 %v703, %v711
    %v714 = vpack.c.bf16 %v713, %v712
    %v715 = vpack.c.bf16 %v482, %v480
    %v717 = vsel %vm502, %v714, 0
    %719 = vmatpush.bf16.msra.mxu0 0
    %720 = vmatpush.bf16.msra.mxu0 0
    %721 = vmatpush.bf16.msra.mxu0 0
    %722 = vmatpush.bf16.msra.mxu0 0
    %723 = vmatpush.bf16.msra.mxu0 0
    %724 = vmatpush.bf16.msra.mxu0 0
    %725 = vmatpush.bf16.msra.mxu0 0
    %726 = vmatpush.bf16.msra.mxu0 %v715
    %727 = vmatmul.bf16.gmra.mxu0 %v717
    %v728 = vpop.f32.mrf.mxu0
    %v729 = vadd.f32 0.0, %v728
    %v730 = vpop.f32.mrf.mxu0
    %v731 = vadd.f32 0.0, %v730
    %732 = vdwg.mxu0
    %v733 = vpack.c.bf16 %v729, %v729
    %v734 = vpack.c.bf16 %v731, %v731
    %735 = vst [vmem:[#allocation2 + $0x14] sm:$0xf] %v733
    %736 = vst [vmem:[#allocation2 + $0x1c] sm:$0xf] %v734
    %v737 = vld [vmem:[#allocation2] sm:$0xff]
    %v738 = vld [vmem:[#allocation2 + $0x8] sm:$0xff]
    %v739 = vld [vmem:[#allocation2 + $0x10] sm:$0xff]
    %v740 = vld [vmem:[#allocation2 + $0x18] sm:$0xff]
    %v741 = vld [vmem:[#allocation8] sm:$0xf]
    %v742 = vld [vmem:[#allocation8 + $0x4] sm:$0xf]
    %v743 = vld [vmem:[#allocation8 + $0x8] sm:$0xf]
    %v744 = vld [vmem:[#allocation8 + $0xc] sm:$0xf]
    %v745 = vld [vmem:[#allocation8 + $0x10] sm:$0xf]
    %v746 = vld [vmem:[#allocation8 + $0x14] sm:$0xf]
    %v747 = vld [vmem:[#allocation8 + $0x18] sm:$0xf]
    %v748 = vld [vmem:[#allocation8 + $0x1c] sm:$0xf]
    %v749 = vld [vmem:[#allocation8 + $0x20] sm:$0xf]
    %v750 = vld [vmem:[#allocation8 + $0x24] sm:$0xf]
    %v751 = vld [vmem:[#allocation8 + $0x28] sm:$0xf]
    %v752 = vld [vmem:[#allocation8 + $0x2c] sm:$0xf]
    %v753 = vld [vmem:[#allocation8 + $0x30] sm:$0xf]
    %v754 = vld [vmem:[#allocation8 + $0x34] sm:$0xf]
    %v755 = vld [vmem:[#allocation8 + $0x38] sm:$0xf]
    %v756 = vld [vmem:[#allocation8 + $0x3c] sm:$0xf]
    %v757 = vld [vmem:[#allocation8 + $0x40] sm:$0xf]
    %v758 = vld [vmem:[#allocation8 + $0x44] sm:$0xf]
    %v759 = vld [vmem:[#allocation8 + $0x48] sm:$0xf]
    %v760 = vld [vmem:[#allocation8 + $0x4c] sm:$0xf]
    %v761 = vld [vmem:[#allocation8 + $0x50] sm:$0xf]
    %v762 = vld [vmem:[#allocation8 + $0x54] sm:$0xf]
    %v763 = vld [vmem:[#allocation8 + $0x58] sm:$0xf]
    %v764 = vld [vmem:[#allocation8 + $0x5c] sm:$0xf]
    %v765 = vld [vmem:[#allocation8 + $0x60] sm:$0xf]
    %v766 = vld [vmem:[#allocation8 + $0x64] sm:$0xf]
    %v767 = vld [vmem:[#allocation8 + $0x68] sm:$0xf]
    %v768 = vld [vmem:[#allocation8 + $0x6c] sm:$0xf]
    %v769 = vld [vmem:[#allocation8 + $0x70] sm:$0xf]
    %v770 = vld [vmem:[#allocation8 + $0x74] sm:$0xf]
    %v771 = vld [vmem:[#allocation8 + $0x78] sm:$0xf]
    %v772 = vld [vmem:[#allocation8 + $0x7c] sm:$0xf]
    %v773 = vld [vmem:[%s3] sm:$0x1]
    %v775 = vperm.slane %v773, 0
    %v781 = vunpack.c.l.b16 %v737
    %v782 = vunpack.c.h.b16 %v737
    %v783 = vunpack.c.l.b16 %v738
    %v784 = vunpack.c.h.b16 %v738
    %v785 = vunpack.c.l.b16 %v739
    %v786 = vunpack.c.h.b16 %v739
    %v787 = vunpack.c.l.b16 %v740
    %v788 = vunpack.c.h.b16 %v740
    %v789 = vpack.c.b16 %v783, %v781
    %v790 = vpack.c.b16 %v784, %v782
    %v791 = vpack.c.b16 %v787, %v785
    %v792 = vpack.c.b16 %v788, %v786
    %v829 = vunpack.c.l.b16 %v741
    %v830 = vunpack.c.l.b16 %v742
    %v831 = vunpack.c.l.b16 %v743
    %v832 = vunpack.c.l.b16 %v744
    %v833 = vunpack.c.l.b16 %v745
    %v834 = vunpack.c.l.b16 %v746
    %v835 = vunpack.c.l.b16 %v747
    %v836 = vunpack.c.l.b16 %v748
    %v837 = vunpack.c.l.b16 %v749
    %v838 = vunpack.c.l.b16 %v750
    %v839 = vunpack.c.l.b16 %v751
    %v840 = vunpack.c.l.b16 %v752
    %v841 = vunpack.c.l.b16 %v753
    %v842 = vunpack.c.l.b16 %v754
    %v843 = vunpack.c.l.b16 %v755
    %v844 = vunpack.c.l.b16 %v756
    %v845 = vunpack.c.l.b16 %v757
    %v846 = vunpack.c.l.b16 %v758
    %v847 = vunpack.c.l.b16 %v759
    %v848 = vunpack.c.l.b16 %v760
    %v849 = vunpack.c.l.b16 %v761
    %v850 = vunpack.c.l.b16 %v762
    %v851 = vunpack.c.l.b16 %v763
    %v852 = vunpack.c.l.b16 %v764
    %v853 = vunpack.c.l.b16 %v765
    %v854 = vunpack.c.l.b16 %v766
    %v855 = vunpack.c.l.b16 %v767
    %v856 = vunpack.c.l.b16 %v768
    %v857 = vunpack.c.l.b16 %v769
    %v858 = vunpack.c.l.b16 %v770
    %v859 = vunpack.c.l.b16 %v771
    %v860 = vunpack.c.l.b16 %v772
    %v861 = vpack.c.b16 %v830, %v829
    %v862 = vpack.c.b16 %v832, %v831
    %v863 = vpack.c.b16 %v834, %v833
    %v864 = vpack.c.b16 %v836, %v835
    %v865 = vpack.c.b16 %v838, %v837
    %v866 = vpack.c.b16 %v840, %v839
    %v867 = vpack.c.b16 %v842, %v841
    %v868 = vpack.c.b16 %v844, %v843
    %v869 = vpack.c.b16 %v846, %v845
    %v870 = vpack.c.b16 %v848, %v847
    %v871 = vpack.c.b16 %v850, %v849
    %v872 = vpack.c.b16 %v852, %v851
    %v873 = vpack.c.b16 %v854, %v853
    %v874 = vpack.c.b16 %v856, %v855
    %v875 = vpack.c.b16 %v858, %v857
    %v876 = vpack.c.b16 %v860, %v859
    %893 = vmatpush.bf16.msra.mxu0 %v868
    %894 = vmatpush.bf16.msra.mxu0 %v867
    %895 = vmatpush.bf16.msra.mxu0 %v866
    %896 = vmatpush.bf16.msra.mxu0 %v865
    %897 = vmatpush.bf16.msra.mxu0 %v864
    %898 = vmatpush.bf16.msra.mxu0 %v863
    %899 = vmatpush.bf16.msra.mxu0 %v862
    %900 = vmatpush.bf16.msra.mxu0 %v861
    %901 = vmatmul.bf16.gmra.mxu0 %v789
    %v902 = vpop.f32.mrf.mxu0
    %v903 = vadd.f32 %v775, %v902
    %v904 = vpop.f32.mrf.mxu0
    %v905 = vadd.f32 %v775, %v904
    %906 = vmatmul.bf16.gmra.mxu0 %v791
    %v907 = vpop.f32.mrf.mxu0
    %v908 = vadd.f32 %v775, %v907
    %v909 = vpop.f32.mrf.mxu0
    %v910 = vadd.f32 %v775, %v909
    %911 = vdwg.mxu0
    %912 = vmatpush.bf16.msra.mxu0 %v876
    %913 = vmatpush.bf16.msra.mxu0 %v875
    %914 = vmatpush.bf16.msra.mxu0 %v874
    %915 = vmatpush.bf16.msra.mxu0 %v873
    %916 = vmatpush.bf16.msra.mxu0 %v872
    %917 = vmatpush.bf16.msra.mxu0 %v871
    %918 = vmatpush.bf16.msra.mxu0 %v870
    %919 = vmatpush.bf16.msra.mxu0 %v869
    %920 = vmatmul.bf16.gmra.mxu0 %v790
    %v921 = vpop.f32.mrf.mxu0
    %v922 = vadd.f32 %v903, %v921
    %v923 = vpop.f32.mrf.mxu0
    %v924 = vadd.f32 %v905, %v923
    %925 = vmatmul.bf16.gmra.mxu0 %v792
    %v926 = vpop.f32.mrf.mxu0
    %v927 = vadd.f32 %v908, %v926
    %v928 = vpop.f32.mrf.mxu0
    %v929 = vadd.f32 %v910, %v928
    %930 = vdwg.mxu0
    %931 = vst [vmem:[#allocation9] sm:$0xff] %v922
    %932 = vst [vmem:[#allocation9 + $0x8] sm:$0xff] %v924
    %933 = vst [vmem:[#allocation9 + $0x10] sm:$0xff] %v927
    %934 = vst [vmem:[#allocation9 + $0x18] sm:$0xff] %v929
    // Predicated region
    $region30: #{tpu_custom_call.1} parent=1 // pred_check
      _
    $region31: #{tpu_custom_call.1} parent=1 // pred_check_branch
      %936 = sbr.rel (0) target = $region33
    $region32: #{tpu_custom_call.1} parent=1 // pred_region
      %938 = vsyncadd [#allocation5], 0
      %s939 = sshll.u32 [#allocation9], 4
      %s940 = int_to_ptr.vmem [resolvable:$true] %s939
      %s941 = sshll.u32 %s4, 4
      %s942 = int_to_ptr.hbm [resolvable:$true] %s941
      %947 = dma.vmem_to_hbm [thread:$0]  %s940, 512, %s942, [#allocation5], 128, 128, 8
    $region33: #{tpu_custom_call.1} parent=1 // pred_fallthru
      _
    // Predicated region
    $region34: #{tpu_custom_call.1} parent=1 // pred_check
      _
    $region35: #{tpu_custom_call.1} parent=1 // pred_check_branch
      %949 = sbr.rel (0) target = $region37
    $region36: #{tpu_custom_call.1} parent=1 // pred_region
      %951 = dma.done [#allocation5], 512
    $region37: #{tpu_custom_call.1} parent=1 // pred_fallthru
      _
    %952 = vsyncpa [#allocation4], 1
    %953 = vsyncpa [#allocation7], 1
    %954 = vsyncpa [#allocation5], 1

</llo_original>
